<compile_context>
chip_gen: v7x
topology: tpu7x:2x2x1
jax: 0.10.0
libtpu: 0.0.40
codegen_flags: <defaults>
</compile_context>

<pallas_src>
import jax
import jax.numpy as jnp
from jax.experimental import pallas as pl
from jax.experimental.pallas import tpu as pltpu

_F32_EPS = float(jnp.finfo(jnp.float32).eps)   # torch.finfo().eps (default f32)
_F32_MAX = float(jnp.finfo(jnp.float32).max)   # torch.finfo().max


# ----------------------------------------------------------------------------
# helpers
# ----------------------------------------------------------------------------
def _round_up(x, m):
    return -(-x // m) * m


def _divisors(n):
    ds = set()
    i = 1
    while i * i <= n:
        if n % i == 0:
            ds.add(i)
            ds.add(n // i)
        i += 1
    return sorted(ds)


def _vmem_capacity_bytes():
    try:
        return int(pltpu.get_tpu_info().vmem_capacity_bytes)
    except Exception:
        return 64 * 1024 * 1024        # conservative (v7x per-core VMEM)


def _pick_tile(R, HW, itemsize, budget_bytes):
    """Choose a legal (row_blk, hw_blk) whose padded VMEM footprint fits the
    per-pass budget; prefer full rows (one long contiguous DMA per block) and
    keep >= 2 row blocks for the megacore when it costs < half the block."""
    sub_pref = 8 * max(1, 4 // itemsize)          # 8 f32, 16 bf16, 32 int8

    def padded_bytes(rows, lanes):
        return _round_up(rows, 8) * _round_up(lanes, 128) * itemsize

    divs_r = _divisors(R)
    row_cands = ([d for d in divs_r if d % sub_pref == 0]
                 or [d for d in divs_r if d % 8 == 0]
                 or [])
    row_cands = sorted(set(row_cands) | {R})      # full dim always legal

    hw_cands = sorted({d for d in _divisors(HW) if d % 128 == 0} | {HW})

    row_min = row_cands[0]
    if padded_bytes(row_min, HW) <= budget_bytes:
        hw_blk = HW                               # full rows preferred
    else:
        fit = [d for d in hw_cands
               if d % 128 == 0 and padded_bytes(row_min, d) <= budget_bytes]
        hw_blk = max(fit) if fit else min(hw_cands)

    fit_rows = [d for d in row_cands if padded_bytes(d, hw_blk) <= budget_bytes]
    if not fit_rows:
        fit_rows = [row_min]
    row_blk = max(fit_rows)

    # megacore: keep at least 2 blocks along the parallel row axis if the
    # smaller block is still at least half the chosen one.
    if R // row_blk == 1:
        smaller = [d for d in fit_rows if R // d >= 2]
        if smaller:
            cand = max(smaller)
            if 2 * padded_bytes(cand, hw_blk) >= padded_bytes(row_blk, hw_blk):
                row_blk = cand

    return row_blk, hw_blk


# ----------------------------------------------------------------------------
# fused single-pass kernel (whole array resident in VMEM; 2x HBM traffic)
# ----------------------------------------------------------------------------
def _normalize_fused(x3, n_elems, vmem_limit):
    N, C, HW = x3.shape

    def kernel(x_ref, o_ref):
        xv = x_ref[...].astype(jnp.float32)                       # (N, C, HW)
        s = jnp.sum(jnp.sum(xv, axis=2, keepdims=True), axis=0, keepdims=True)
        mean = s * (1.0 / float(n_elems))                         # (1, C, 1)
        d = xv - mean
        v = jnp.sum(jnp.sum(d * d, axis=2, keepdims=True), axis=0, keepdims=True)
        var = v / float(n_elems - 1)      # n_elems == 1 -> 0/0 = NaN, like torch ddof=1
        std = jnp.clip(jnp.sqrt(var), _F32_EPS, _F32_MAX)
        o_ref[...] = (d * (1.0 / std)).astype(o_ref.dtype)

    return pl.pallas_call(
        kernel,
        out_shape=jax.ShapeDtypeStruct((N, C, HW), x3.dtype),
        compiler_params=pltpu.CompilerParams(vmem_limit_bytes=int(vmem_limit)),
    )(x3)


# ----------------------------------------------------------------------------
# two-pass streaming kernels on a dense (N*C, HW) layout
# ----------------------------------------------------------------------------
def _stats_kernel(x_ref, pilot_ref, s_ref, sq_ref):
    # x_ref: (rb, hb); pilot_ref: (rb, 1) f32; s_ref/sq_ref: (rb, 1) f32
    # accumulators resident in VMEM across the inner ("arbitrary") hw axis.
    @pl.when(pl.program_id(1) == 0)
    def _():
        s_ref[...] = jnp.zeros_like(s_ref)
        sq_ref[...] = jnp.zeros_like(sq_ref)

    x = x_ref[...].astype(jnp.float32) - pilot_ref[...]
    s_ref[...] += jnp.sum(x, axis=1, keepdims=True)
    sq_ref[...] += jnp.sum(x * x, axis=1, keepdims=True)


def _normalize_kernel(x_ref, sb_ref, o_ref):
    # x_ref/o_ref: (rb, hb); sb_ref: (rb, 2) f32 packed [scale, bias].
    x = x_ref[...].astype(jnp.float32)
    sb = sb_ref[...]
    scale = sb[:, 0:1]
    bias = sb[:, 1:2]
    o_ref[...] = (x * scale + bias).astype(o_ref.dtype)


def _normalize_two_pass(x2, N, C, HW, vmem_cap):
    R = N * C
    n_elems = N * HW
    itemsize = jnp.dtype(x2.dtype).itemsize

    pass1_budget = 6 << 20        # only the input stream is double-buffered
    pass2_budget = 4 << 20        # input + output streams double-buffered
    vmem_limit = int(min(48 << 20, int(vmem_cap * 0.8)))

    # Per-channel pilot (= X[0, c, 0, 0]) for shift-stabilized statistics.
    pilot_c = x2[:C, 0]                                   # (C,) input dtype
    pilot_f32 = pilot_c.astype(jnp.float32)
    pilot_rows = jnp.tile(pilot_f32, N).reshape(R, 1)     # (R, 1), row r -> channel r % C

    # Lane-dense tiles: pad HW to a multiple of 128 only if full rows exceed
    # the (tighter) pass-2 budget. Pads hold the row pilot value so they add
    # exactly zero to the shifted sums; true n_elems is used for the stats.
    HW_used, pad = HW, 0
    if HW % 128 != 0:
        legal_rows = [d for d in _divisors(R) if d % 8 == 0]
        min_rows = min(legal_rows) if legal_rows else R
        if _round_up(min_rows, 8) * _round_up(HW, 128) * itemsize > pass2_budget:
            HW_used = _round_up(HW, 128)
            pad = HW_used - HW
            pad_vals = jnp.broadcast_to(jnp.tile(pilot_c, N).reshape(R, 1), (R, pad))
            x2 = jnp.concatenate([x2, pad_vals], axis=1)

    rb1, hb1 = _pick_tile(R, HW_used, itemsize, pass1_budget)
    rb2, hb2 = _pick_tile(R, HW_used, itemsize, pass2_budget)

    # ---- pass 1: pilot-shifted sum / sum-of-squares, accumulated in VMEM ----
    s_rows, sq_rows = pl.pallas_call(
        _stats_kernel,
        out_shape=(jax.ShapeDtypeStruct((R, 1), jnp.float32),
                   jax.ShapeDtypeStruct((R, 1), jnp.float32)),
        grid=(R // rb1, HW_used // hb1),
        in_specs=[pl.BlockSpec((rb1, hb1), lambda i, j: (i, j)),
                  pl.BlockSpec((rb1, 1), lambda i, j: (i, 0))],
        out_specs=(pl.BlockSpec((rb1, 1), lambda i, j: (i, 0)),
                   pl.BlockSpec((rb1, 1), lambda i, j: (i, 0))),
        compiler_params=pltpu.CompilerParams(
            dimension_semantics=("parallel", "arbitrary"),
            vmem_limit_bytes=vmem_limit),
    )(x2, pilot_rows)

    # ---- tiny O(C) combine + stats math in plain JAX -------------------------
    s = jnp.sum(s_rows.reshape(N, C), axis=0)             # (C,) shifted sums
    sq = jnp.sum(sq_rows.reshape(N, C), axis=0)           # (C,) shifted sumsq
    mean = pilot_f32 + s / float(n_elems)
    var = (sq - s * s / float(n_elems)) / float(n_elems - 1)   # 0/0 -> NaN (torch ddof=1)
    var = jnp.maximum(var, 0.0)
    std = jnp.clip(jnp.sqrt(var), _F32_EPS, _F32_MAX)
    scale = 1.0 / std
    bias = -mean * scale
    sb_rows = jnp.tile(jnp.stack([scale, bias], axis=1), (N, 1))   # (R, 2) f32

    # ---- pass 2: streaming normalize  x * scale + bias -----------------------
    data2 = pl.BlockSpec((rb2, hb2), lambda i, j: (i, j))
    out2 = pl.pallas_call(
        _normalize_kernel,
        out_shape=jax.ShapeDtypeStruct((R, HW_used), x2.dtype),
        grid=(R // rb2, HW_used // hb2),
        in_specs=[data2, pl.BlockSpec((rb2, 2), lambda i, j: (i, 0))],
        out_specs=data2,
        compiler_params=pltpu.CompilerParams(
            dimension_semantics=("parallel", "parallel"),
            vmem_limit_bytes=vmem_limit),
    )(x2, sb_rows)

    if pad:
        out2 = out2[:, :HW]
    return out2


# ----------------------------------------------------------------------------
# public wrapper
# ----------------------------------------------------------------------------
def normalize_batch(x: jax.Array, *, force_two_pass: bool = False) -> jax.Array:
    """Pallas implementation of NormalizeBatch(axis=[0, 2, 3]) for NCHW input."""
    N, C, H, W = x.shape
    HW = H * W
    R = N * C
    n_elems = N * HW
    itemsize = jnp.dtype(x.dtype).itemsize
    cap = _vmem_capacity_bytes()

    # Fused gate: in + out buffers (input dtype) plus ~3 full-size f32
    # intermediates, all with VMEM sublane/lane padding accounted for.
    c_pad_dtype = _round_up(C, 8 * max(1, 4 // itemsize))
    hw_pad = _round_up(HW, 128)
    padded_dtype_bytes = N * c_pad_dtype * hw_pad * itemsize
    padded_f32_bytes = N * _round_up(C, 8) * hw_pad * 4
    fused_est = 2 * padded_dtype_bytes + 3 * padded_f32_bytes
    fused_budget = int(cap * 0.7)

    if (not force_two_pass) and fused_est <= fused_budget:
        vmem_limit = min(int(cap * 0.85), fused_est + (8 << 20))
        out3 = _normalize_fused(x.reshape(N, C, HW), n_elems, vmem_limit)
        return out3.reshape(N, C, H, W)

    out2 = _normalize_two_pass(x.reshape(R, HW), N, C, HW, cap)
    return out2.reshape(N, C, H, W)


# ----------------------------------------------------------------------------
# pure-JAX reference mirroring the PyTorch forward
# ----------------------------------------------------------------------------
def _reference(x: jax.Array) -> jax.Array:
    xf = x.astype(jnp.float32)
    mean = jnp.mean(xf, axis=(0, 2, 3), keepdims=True)
    std = jnp.std(xf, axis=(0, 2, 3), keepdims=True, ddof=1)
    std = jnp.clip(std, _F32_EPS, _F32_MAX)
    return ((xf - mean) / std).astype(x.dtype)


if __name__ == "__main__":
    key = jax.random.PRNGKey(0)

    # Small NCHW batch consistent with the module's intended (image batch) use.
    N, C, H, W = 2, 4, 16, 16
    x = jax.random.normal(key, (N, C, H, W), dtype=jnp.float32) * 3.0 + 1.5
    ref = _reference(x)

    # Fused single-pass path (array fits in VMEM at this size).
    out_fused = jax.block_until_ready(normalize_batch(x))
    assert out_fused.shape == x.shape and out_fused.dtype == x.dtype
    assert jnp.allclose(out_fused, ref, atol=1e-4, rtol=1e-4), "fused path mismatch"

    # Streaming two-pass path, exercised explicitly at the same small size.
    out_tiled = jax.block_until_ready(normalize_batch(x, force_two_pass=True))
    assert jnp.allclose(out_tiled, ref, atol=1e-4, rtol=1e-4), "two-pass path mismatch"

    # Image-like small-C case (C=3, not a multiple of 8) on the dense layout.
    x3 = jax.random.normal(jax.random.PRNGKey(0), (2, 3, 8, 16), jnp.float32) * 0.5 - 2.0
    out3 = jax.block_until_ready(normalize_batch(x3, force_two_pass=True))
    assert jnp.allclose(out3, _reference(x3), atol=1e-4, rtol=1e-4), "C=3 mismatch"

    print("KERNEL_OK")
</pallas_src>

<mosaic_0001>
module attributes {stable_mosaic.version = 11 : i64} {
  func.func @kernel(%arg0: memref<2x4x256xf32, #tpu.memory_space<vmem>>, %arg1: memref<2x4x256xf32, #tpu.memory_space<vmem>>) attributes {dimension_semantics = [], scalar_prefetch = 0 : i64, scratch_operands = 0 : i64, tpu.core_type = #tpu.core_type<tc>} {
    %c0 = arith.constant 0 : index
    %c0_0 = arith.constant 0 : index
    %c0_1 = arith.constant 0 : index
    %0 = vector.load %arg0[%c0, %c0_0, %c0_1] : memref<2x4x256xf32, #tpu.memory_space<vmem>>, vector<2x4x256xf32>
    %cst = arith.constant dense<0.000000e+00> : vector<2x4xf32>
    %1 = vector.multi_reduction <add>, %0, %cst [2] : vector<2x4x256xf32> to vector<2x4xf32>
    %2 = vector.shape_cast %1 : vector<2x4xf32> to vector<2x4x1xf32>
    %cst_2 = arith.constant dense<0.000000e+00> : vector<4x1xf32>
    %3 = vector.multi_reduction <add>, %2, %cst_2 [0] : vector<2x4x1xf32> to vector<4x1xf32>
    %4 = vector.shape_cast %3 : vector<4x1xf32> to vector<1x4x1xf32>
    %cst_3 = arith.constant 0.001953125 : f32
    %5 = vector.broadcast %cst_3 : f32 to vector<1x4x1xf32>
    %6 = arith.mulf %4, %5 : vector<1x4x1xf32>
    %7 = vector.broadcast %6 : vector<1x4x1xf32> to vector<2x4x256xf32>
    %8 = arith.subf %0, %7 : vector<2x4x256xf32>
    %9 = arith.mulf %8, %8 : vector<2x4x256xf32>
    %cst_4 = arith.constant dense<0.000000e+00> : vector<2x4xf32>
    %10 = vector.multi_reduction <add>, %9, %cst_4 [2] : vector<2x4x256xf32> to vector<2x4xf32>
    %11 = vector.shape_cast %10 : vector<2x4xf32> to vector<2x4x1xf32>
    %cst_5 = arith.constant dense<0.000000e+00> : vector<4x1xf32>
    %12 = vector.multi_reduction <add>, %11, %cst_5 [0] : vector<2x4x1xf32> to vector<4x1xf32>
    %13 = vector.shape_cast %12 : vector<4x1xf32> to vector<1x4x1xf32>
    %cst_6 = arith.constant 5.110000e+02 : f32
    %14 = vector.broadcast %cst_6 : f32 to vector<1x4x1xf32>
    %15 = arith.divf %13, %14 : vector<1x4x1xf32>
    %16 = math.sqrt %15 : vector<1x4x1xf32>
    %cst_7 = arith.constant 1.1920929E-7 : f32
    %cst_8 = arith.constant 3.40282347E+38 : f32
    %17 = vector.broadcast %cst_7 : f32 to vector<1x4x1xf32>
    %18 = arith.maximumf %17, %16 : vector<1x4x1xf32>
    %19 = vector.broadcast %cst_8 : f32 to vector<1x4x1xf32>
    %20 = arith.minimumf %19, %18 : vector<1x4x1xf32>
    %cst_9 = arith.constant 1.000000e+00 : f32
    %21 = vector.broadcast %cst_9 : f32 to vector<1x4x1xf32>
    %22 = arith.divf %21, %20 : vector<1x4x1xf32>
    %23 = vector.broadcast %22 : vector<1x4x1xf32> to vector<2x4x256xf32>
    %24 = arith.mulf %8, %23 : vector<2x4x256xf32>
    %c0_10 = arith.constant 0 : index
    %c0_11 = arith.constant 0 : index
    %c0_12 = arith.constant 0 : index
    %25 = vector.load %arg1[%c0_10, %c0_11, %c0_12] : memref<2x4x256xf32, #tpu.memory_space<vmem>>, vector<2x4x256xf32>
    tpu.vector_store %arg1[%c0_10, %c0_11, %c0_12], %24 {strides = array<i32>} : memref<2x4x256xf32, #tpu.memory_space<vmem>>, vector<2x4x256xf32>,
    return
  }
}

</mosaic_0001>

<llo_original>
// kernel: tpu_custom_call.1
$region0: #{tpu_custom_call.1}
  #allocation0 [shape = 'u32[]', space=smem, size = 0x4, offset = 0x4, fixed_abs, tag = 'smem constant byte address 0x4 - core index']
  #allocation1 [shape = 'u32[144,128]{1,0:T(1,128)}', space=vmem, size = 0x12000, scoped, tag = 'internal scratch']
  %s0 = inlined_call_operand.hbm [shape: f32[2,4,256], index: 0, kind: input, shape index: {}]
  %s1 = inlined_call_operand.hbm [shape: f32[2,4,256], index: 1, kind: output, shape index: {}]
  %s2 = sld [smem:[#allocation0]]
  $region18: #{tpu_custom_call.1} parent=0
    _
  %s4 = ssub.s32 1, %s2
  %s5 = scalar_select 0, %s4, %s2
  $region1: #{tpu_custom_call.1} parent=0
    #allocation2 [shape = 'u8[8192]{0}', space=vmem, size = 0x2000, scoped, tag = 'input window, operand 0, single buffered']
    #allocation3 [shape = 's32[1]{0}', space=sflag, size = 0x4, scoped, tag = 'scoped memory for tpu_custom_call.1']
    #allocation4 [shape = 's32[1]{0}', space=sflag, size = 0x4, scoped, tag = 'scoped memory for tpu_custom_call.1']
    #allocation5 [shape = 'u8[8192]{0}', space=vmem, size = 0x2000, scoped, tag = 'output window, operand 0, single buffered']
    %6 = vsyncpa [#allocation3], 0
    %7 = vsyncpa [#allocation4], 0
    // Predicated region
    $region2: #{tpu_custom_call.1} parent=1 // pred_check
      _
    $region3: #{tpu_custom_call.1} parent=1 // pred_check_branch
      %9 = sbr.rel (0) target = $region5
    $region4: #{tpu_custom_call.1} parent=1 // pred_region
      %s11 = ssub.s32 256, 256
      %12 = vsyncadd [#allocation3], %s11
      %s13 = sshll.u32 [#allocation2], 4
      %s14 = int_to_ptr.vmem [resolvable:$true] %s13
      %19 = dma.hbm_to_vmem [thread:$0]  %s0, 256, %s14, [#allocation3], 128, 128, 8
    $region5: #{tpu_custom_call.1} parent=1 // pred_fallthru
      _
    // Predicated region
    $region6: #{tpu_custom_call.1} parent=1 // pred_check
      _
    $region7: #{tpu_custom_call.1} parent=1 // pred_check_branch
      %21 = sbr.rel (0) target = $region9
    $region8: #{tpu_custom_call.1} parent=1 // pred_region
      %22 = dma.done [#allocation3], 256
    $region9: #{tpu_custom_call.1} parent=1 // pred_fallthru
      _
    %v23 = vld [vmem:[#allocation2] sm:$0xff]
    %v24 = vld [vmem:[#allocation2 + $0x8] sm:$0xff]
    %v27 = vcombine.high %v23, %v23
    %v28 = vcombine.high %v24, %v24
    %vm31 = vcmask 1043456
    %v32 = vsel %vm31, %v23, 0.0
    %v33 = vsel %vm31, %v27, 0.0
    %v34 = vadd.f32 %v32, %v33
    %35 = vadd.xlane.f32.xlu0 %v34
    %v36 = vpop.xlane.xlu0 %35
    %v37 = vsel %vm31, %v24, 0.0
    %v38 = vsel %vm31, %v28, 0.0
    %v39 = vadd.f32 %v37, %v38
    %40 = vadd.xlane.f32.xlu0 %v39
    %v41 = vpop.xlane.xlu0 %40
    %v42 = vsel %vm31, %v36, 0.0
    %v43 = vsel %vm31, %v41, 0.0
    %v44 = vadd.f32 %v42, %v43
    %v45 = vmul.f32 %v44, 0.001953125
    %v48 = vunpack.c.l.s4 839922192
    %v49 = vunpack.c.0.s8 %v48
    %v50 = vlaneseq
    %v51 = vshrl.u32 %v50, 7
    %v52 = vsub.s32 %v49, %v51
    %v53 = vrot.slane %v45, %v52
    %v55 = vsub.f32 %v23, %v53
    %v56 = vsub.f32 %v24, %v53
    %v57 = vmul.f32 %v55, %v55
    %v58 = vmul.f32 %v56, %v56
    %v61 = vcombine.high %v57, %v57
    %v62 = vcombine.high %v58, %v58
    %v65 = vsel %vm31, %v57, 0.0
    %v66 = vsel %vm31, %v61, 0.0
    %v67 = vadd.f32 %v65, %v66
    %68 = vadd.xlane.f32.xlu0 %v67
    %v69 = vpop.xlane.xlu0 %68
    %v70 = vsel %vm31, %v58, 0.0
    %v71 = vsel %vm31, %v62, 0.0
    %v72 = vadd.f32 %v70, %v71
    %73 = vadd.xlane.f32.xlu0 %v72
    %v74 = vpop.xlane.xlu0 %73
    %v75 = vsel %vm31, %v69, 0.0
    %v76 = vsel %vm31, %v74, 0.0
    %v77 = vadd.f32 %v75, %v76
    %v78 = vrcp.pop 511.0
    %v79 = vmul.f32 %v77, %v78
    %v80 = vrsqrt.pop %v79
    %v81 = vmul.f32 %v79, %v80
    %vm82 = vcmp.eq.f32.partialorder %v79, inf
    %v83 = vsel %vm82, %v79, %v81
    %vm84 = vcmp.eq.f32.partialorder %v79, 0.0
    %v85 = vand.u32 %v79, 2147483648
    %v86 = vsel %vm84, %v85, %v83
    %v87 = vmax.f32 %v86, 1.1920929e-07
    %v88 = vmin.f32 %v87, 3.4028235e+38
    %v89 = vrcp.pop %v88
    %v90 = vmul.f32 1.0, %v89
    %v93 = vunpack.c.l.s4 839922192
    %v94 = vunpack.c.0.s8 %v93
    %v95 = vlaneseq
    %v96 = vshrl.u32 %v95, 7
    %v97 = vsub.s32 %v94, %v96
    %v98 = vrot.slane %v90, %v97
    %v100 = vmul.f32 %v55, %v98
    %v101 = vmul.f32 %v56, %v98
    %102 = vst [vmem:[#allocation5] sm:$0xff] %v100
    %103 = vst [vmem:[#allocation5 + $0x8] sm:$0xff] %v101
    // Predicated region
    $region10: #{tpu_custom_call.1} parent=1 // pred_check
      _
    $region11: #{tpu_custom_call.1} parent=1 // pred_check_branch
      %105 = sbr.rel (0) target = $region13
    $region12: #{tpu_custom_call.1} parent=1 // pred_region
      %s107 = ssub.s32 256, 256
      %108 = vsyncadd [#allocation4], %s107
      %s109 = sshll.u32 [#allocation5], 4
      %s110 = int_to_ptr.vmem [resolvable:$true] %s109
      %115 = dma.vmem_to_hbm [thread:$0]  %s110, 256, %s1, [#allocation4], 128, 128, 8
    $region13: #{tpu_custom_call.1} parent=1 // pred_fallthru
      _
    // Predicated region
    $region14: #{tpu_custom_call.1} parent=1 // pred_check
      _
    $region15: #{tpu_custom_call.1} parent=1 // pred_check_branch
      %117 = sbr.rel (0) target = $region17
    $region16: #{tpu_custom_call.1} parent=1 // pred_region
      %118 = dma.done [#allocation4], 256
    $region17: #{tpu_custom_call.1} parent=1 // pred_fallthru
      _
    %119 = vsyncpa [#allocation3], 1
    %120 = vsyncpa [#allocation4], 1

</llo_original>
